<compile_context>
chip_gen: v7x
topology: tpu7x:2x2x1
jax: 0.10.0
libtpu: 0.0.40
codegen_flags: <defaults>
</compile_context>

<pallas_src>
import numpy as np
import jax
import jax.numpy as jnp
from jax.experimental import pallas as pl
from jax.experimental.pallas import tpu as pltpu


# ----------------------------------------------------------------------------
# Kernels
# ----------------------------------------------------------------------------
def _node_kernel(adj_ref, x_ref, wn_ref, bn_ref, wn1_ref, wn2_ref,
                 node_ref, n1p_ref, n2p_ref):
    """Per (batch, i-row-tile): node path + hoisted EdgeUpdate node projections."""
    adj = adj_ref[0]                                  # (TI, S, E)
    x = x_ref[0]                                      # (S, D)

    # 'avg' pooling over the dep-embed channel commutes with the matmul:
    #   mean_e(A_e @ X) == mean_e(A_e) @ X
    adj_mean = jnp.mean(adj, axis=-1)                 # (TI, S)

    ax = jnp.dot(adj_mean, x, preferred_element_type=jnp.float32)       # (TI, D)
    node = jnp.maximum(
        jnp.dot(ax, wn_ref[...], preferred_element_type=jnp.float32) + bn_ref[...],
        0.0)                                                             # (TI, D)
    node_ref[0] = node.astype(node_ref.dtype)

    # Hoisted node-side projections of the EdgeUpdate linear (computed once per
    # sequence position instead of once per (i, j) pair).
    n1p_ref[0] = jnp.dot(node, wn1_ref[...],
                         preferred_element_type=jnp.float32).astype(n1p_ref.dtype)
    n2p_ref[0] = jnp.dot(node, wn2_ref[...],
                         preferred_element_type=jnp.float32).astype(n2p_ref.dtype)


def _edge_kernel(adj_ref, n1p_ref, n2p_ref, we_ref, be_ref, edge_ref):
    """Per (batch, i-row-tile): EdgeUpdate output for all (i in tile, j)."""
    adj = adj_ref[0]                                  # (TI, S, E)
    ti, s, e = adj.shape
    # One lane-contiguous MXU matmul over all TI*S edge rows of this tile
    # (S is padded to a multiple of 8, so the collapse is layout-trivial).
    edge_proj = jnp.dot(adj.reshape(ti * s, e), we_ref[...],
                        preferred_element_type=jnp.float32).reshape(ti, s, e)
    edge = (edge_proj
            + n1p_ref[0][None, :, :]                  # node1[b, i, j] = node[b, j]
            + n2p_ref[0][:, None, :]                  # node2[b, i, j] = node[b, i]
            + be_ref[...][None, :, :])                # bias
    edge_ref[0] = edge.astype(edge_ref.dtype)


# ----------------------------------------------------------------------------
# Wrapper
# ----------------------------------------------------------------------------
def _pick_row_tile(s_pad, e, target_rows=128, vmem_budget_bytes=8 * 1024 * 1024):
    """Largest i-row tile (multiple of 8, dividing s_pad) whose adj-in + edge-out
    blocks (double-buffered) stay within a conservative VMEM budget."""
    bytes_per_i_row = s_pad * e * 4                   # one i-row of adj or edge, f32
    max_rows = vmem_budget_bytes // max(1, 4 * bytes_per_i_row)
    target = min(target_rows, max_rows)
    target = max(8, (target // 8) * 8)
    if s_pad <= target:
        return s_pad
    t = target
    while t >= 8:
        if s_pad % t == 0:
            return t
        t -= 8
    return 8


def graph_conv_layer_forward(weight_adj, node_hiddens, params, *, row_tile=None):
    """weight_adj: (B, S, S, E) f32, node_hiddens: (B, S, D) f32.
    Returns (edge_outputs (B,S,S,E), node_outputs (B,S,D))."""
    B, S, D = node_hiddens.shape
    E = weight_adj.shape[-1]

    # Pad sequence axis to a multiple of 8 (f32 sublane count). Padded rows /
    # columns are zero, so the trimmed outputs are unaffected.
    S_pad = ((S + 7) // 8) * 8
    if S_pad != S:
        weight_adj = jnp.pad(weight_adj,
                             ((0, 0), (0, S_pad - S), (0, S_pad - S), (0, 0)))
        node_hiddens = jnp.pad(node_hiddens, ((0, 0), (0, S_pad - S), (0, 0)))

    if row_tile is None:
        row_tile = _pick_row_tile(S_pad, E)
    TI = int(row_tile)
    assert S_pad % TI == 0, (S_pad, TI)
    grid = (B, S_pad // TI)

    # Advisory cost estimates so XLA schedules the surrounding glue sensibly.
    flops_node = int(B * S_pad * (S_pad * E + 2 * S_pad * D + 2 * D * D + 4 * D * E))
    bytes_node = 4 * int(B * S_pad * S_pad * E + B * S_pad * D
                         + D * D + D + 2 * D * E + B * S_pad * (D + 2 * E))
    flops_edge = int(B * S_pad * S_pad * (2 * E * E + 3 * E))
    bytes_edge = 4 * int(2 * B * S_pad * S_pad * E + 2 * B * S_pad * E + E * E + E)

    # ---- kernel 1: node path + hoisted EdgeUpdate node projections ----------
    node_out, n1p, n2p = pl.pallas_call(
        _node_kernel,
        out_shape=(jax.ShapeDtypeStruct((B, S_pad, D), jnp.float32),
                   jax.ShapeDtypeStruct((B, S_pad, E), jnp.float32),
                   jax.ShapeDtypeStruct((B, S_pad, E), jnp.float32)),
        grid=grid,
        in_specs=[
            pl.BlockSpec((1, TI, S_pad, E), lambda b, it: (b, it, 0, 0)),  # adj tile
            pl.BlockSpec((1, S_pad, D), lambda b, it: (b, 0, 0)),          # node_hiddens
            pl.BlockSpec((D, D), lambda b, it: (0, 0)),                    # W_node^T
            pl.BlockSpec((1, D), lambda b, it: (0, 0)),                    # b_node
            pl.BlockSpec((D, E), lambda b, it: (0, 0)),                    # We_n1
            pl.BlockSpec((D, E), lambda b, it: (0, 0)),                    # We_n2
        ],
        out_specs=(pl.BlockSpec((1, TI, D), lambda b, it: (b, it, 0)),
                   pl.BlockSpec((1, TI, E), lambda b, it: (b, it, 0)),
                   pl.BlockSpec((1, TI, E), lambda b, it: (b, it, 0))),
        compiler_params=pltpu.CompilerParams(
            dimension_semantics=("parallel", "parallel")),
        cost_estimate=pl.CostEstimate(flops=flops_node, transcendentals=0,
                                      bytes_accessed=bytes_node),
    )(weight_adj, node_hiddens,
      params["w_node"], params["b_node"], params["we_n1"], params["we_n2"])

    # ---- kernel 2: EdgeUpdate output ----------------------------------------
    edge_out = pl.pallas_call(
        _edge_kernel,
        out_shape=jax.ShapeDtypeStruct((B, S_pad, S_pad, E), jnp.float32),
        grid=grid,
        in_specs=[
            pl.BlockSpec((1, TI, S_pad, E), lambda b, it: (b, it, 0, 0)),  # adj tile
            pl.BlockSpec((1, S_pad, E), lambda b, it: (b, 0, 0)),          # n1p (all j)
            pl.BlockSpec((1, TI, E), lambda b, it: (b, it, 0)),            # n2p (i tile)
            pl.BlockSpec((E, E), lambda b, it: (0, 0)),                    # We_edge
            pl.BlockSpec((1, E), lambda b, it: (0, 0)),                    # b_edge
        ],
        out_specs=pl.BlockSpec((1, TI, S_pad, E), lambda b, it: (b, it, 0, 0)),
        compiler_params=pltpu.CompilerParams(
            dimension_semantics=("parallel", "parallel")),
        cost_estimate=pl.CostEstimate(flops=flops_edge, transcendentals=0,
                                      bytes_accessed=bytes_edge),
    )(weight_adj, n1p, n2p, params["we_e"], params["b_edge"])

    if S_pad != S:
        edge_out = edge_out[:, :S, :S, :]
        node_out = node_out[:, :S, :]
    return edge_out, node_out


# ----------------------------------------------------------------------------
# Parameters & reference
# ----------------------------------------------------------------------------
def make_params(D, E, key):
    """Deterministic init mirroring the PyTorch module's shapes.
    torch Linear weights are (out, in); we pre-transpose / column-split them."""
    k1, k2, k3, k4 = jax.random.split(key, 4)
    w_node_torch = jax.random.normal(k1, (D, D), jnp.float32) * 0.05       # W.weight
    b_node = jax.random.normal(k2, (D,), jnp.float32) * 0.05               # W.bias
    w_edge_torch = jax.random.normal(k3, (E, E + 2 * D), jnp.float32) * 0.05  # highway.W.weight
    b_edge = jax.random.normal(k4, (E,), jnp.float32) * 0.05               # highway.W.bias
    w_edge_full = w_edge_torch.T          # (E + 2D, E); input order [edge, node1, node2]
    return {
        "w_node": w_node_torch.T,         # (D, D)
        "b_node": b_node.reshape(1, D),
        "we_e": w_edge_full[:E],          # (E, E)   edge part
        "we_n1": w_edge_full[E:E + D],    # (D, E)   node1 (= node[b, j]) part
        "we_n2": w_edge_full[E + D:],     # (D, E)   node2 (= node[b, i]) part
        "b_edge": b_edge.reshape(1, E),
    }


def reference_forward(weight_adj, node_hiddens, params):
    """Pure-JAX transliteration of the PyTorch forward (op-for-op)."""
    B, S, D = node_hiddens.shape
    E = weight_adj.shape[-1]
    wa = jnp.transpose(weight_adj, (0, 3, 1, 2))                          # (B,E,S,S)
    nh = jnp.broadcast_to(node_hiddens[:, None, :, :], (B, E, S, D))
    ax = jnp.matmul(wa, nh)                                               # (B,E,S,D)
    ax = jnp.mean(ax, axis=1)                                             # 'avg' pooling
    node = jax.nn.relu(ax @ params["w_node"] + params["b_node"][0])       # (B,S,D)
    n1 = jnp.broadcast_to(node[:, None, :, :], (B, S, S, D))              # [b,i,j]=node[b,j]
    n2 = jnp.transpose(n1, (0, 2, 1, 3))                                  # [b,i,j]=node[b,i]
    w_full = jnp.concatenate([params["we_e"], params["we_n1"], params["we_n2"]], axis=0)
    inp = jnp.concatenate([weight_adj, n1, n2], axis=-1)                  # (B,S,S,E+2D)
    edge = inp @ w_full + params["b_edge"][0]                             # (B,S,S,E)
    return edge, node


# ----------------------------------------------------------------------------
if __name__ == "__main__":
    B, S, D, E = 2, 8, 32, 16                      # batch, seq, gcn_dim, dep_embed_dim
    key = jax.random.PRNGKey(0)
    ka, kx, kp = jax.random.split(key, 3)
    weight_adj = jax.random.normal(ka, (B, S, S, E), jnp.float32)
    node_hiddens = jax.random.normal(kx, (B, S, D), jnp.float32)
    params = make_params(D, E, kp)

    edge_out, node_out = graph_conv_layer_forward(weight_adj, node_hiddens, params)
    edge_out = jax.block_until_ready(edge_out)
    node_out = jax.block_until_ready(node_out)

    edge_ref, node_ref = reference_forward(weight_adj, node_hiddens, params)
    assert edge_out.shape == (B, S, S, E), edge_out.shape
    assert node_out.shape == (B, S, D), node_out.shape
    np.testing.assert_allclose(np.asarray(node_out), np.asarray(node_ref),
                               rtol=1e-4, atol=1e-4)
    np.testing.assert_allclose(np.asarray(edge_out), np.asarray(edge_ref),
                               rtol=1e-4, atol=1e-4)
    print("KERNEL_OK")
</pallas_src>

<mosaic_0001>
module attributes {stable_mosaic.version = 11 : i64} {
  func.func @_node_kernel(%arg0: i32, %arg1: i32, %arg2: memref<1x8x8x16xf32, #tpu.memory_space<vmem>>, %arg3: memref<1x8x32xf32, #tpu.memory_space<vmem>>, %arg4: memref<32x32xf32, #tpu.memory_space<vmem>>, %arg5: memref<1x32xf32, #tpu.memory_space<vmem>>, %arg6: memref<32x16xf32, #tpu.memory_space<vmem>>, %arg7: memref<32x16xf32, #tpu.memory_space<vmem>>, %arg8: memref<1x8x32xf32, #tpu.memory_space<vmem>>, %arg9: memref<1x8x16xf32, #tpu.memory_space<vmem>>, %arg10: memref<1x8x16xf32, #tpu.memory_space<vmem>>) attributes {dimension_semantics = [#tpu.dimension_semantics<parallel>, #tpu.dimension_semantics<parallel>], iteration_bounds = array<i64: 2, 1>, scalar_prefetch = 0 : i64, scratch_operands = 0 : i64, tpu.core_type = #tpu.core_type<tc>, window_params = [{transform_indices = @transform_0, window_bounds = array<i64: 1, 8, 8, 16>}, {transform_indices = @transform_1, window_bounds = array<i64: 1, 8, 32>}, {pipeline_mode = #tpu.pipeline_mode<synchronous>, transform_indices = @transform_2, window_bounds = array<i64: 32, 32>}, {pipeline_mode = #tpu.pipeline_mode<synchronous>, transform_indices = @transform_3, window_bounds = array<i64: 1, 32>}, {pipeline_mode = #tpu.pipeline_mode<synchronous>, transform_indices = @transform_4, window_bounds = array<i64: 32, 16>}, {pipeline_mode = #tpu.pipeline_mode<synchronous>, transform_indices = @transform_5, window_bounds = array<i64: 32, 16>}, {transform_indices = @transform_6, window_bounds = array<i64: 1, 8, 32>}, {transform_indices = @transform_7, window_bounds = array<i64: 1, 8, 16>}, {transform_indices = @transform_8, window_bounds = array<i64: 1, 8, 16>}]} {
    %c0 = arith.constant 0 : index
    %c0_0 = arith.constant 0 : index
    %c0_1 = arith.constant 0 : index
    %c0_2 = arith.constant 0 : index
    %0 = vector.load %arg2[%c0, %c0_0, %c0_1, %c0_2] : memref<1x8x8x16xf32, #tpu.memory_space<vmem>>, vector<1x8x8x16xf32>
    %1 = vector.shape_cast %0 : vector<1x8x8x16xf32> to vector<8x8x16xf32>
    %c0_3 = arith.constant 0 : index
    %c0_4 = arith.constant 0 : index
    %c0_5 = arith.constant 0 : index
    %2 = vector.load %arg3[%c0_3, %c0_4, %c0_5] : memref<1x8x32xf32, #tpu.memory_space<vmem>>, vector<1x8x32xf32>
    %3 = vector.shape_cast %2 : vector<1x8x32xf32> to vector<8x32xf32>
    %cst = arith.constant dense<0.000000e+00> : vector<8x8xf32>
    %4 = vector.multi_reduction <add>, %1, %cst [2] : vector<8x8x16xf32> to vector<8x8xf32>
    %cst_6 = arith.constant 1.600000e+01 : f32
    %5 = vector.broadcast %cst_6 : f32 to vector<8x8xf32>
    %6 = arith.divf %4, %5 : vector<8x8xf32>
    %cst_7 = arith.constant dense<0.000000e+00> : vector<8x32xf32>
    %7 = tpu.matmul %6, %3, %cst_7 {dimension_numbers = #tpu.dot_dimension_numbers<[1], [0], [0], [1], [0, 0, 1, 1], [], []>} : vector<8x8xf32>, vector<8x32xf32>, vector<8x32xf32> -> vector<8x32xf32>
    %c0_8 = arith.constant 0 : index
    %c0_9 = arith.constant 0 : index
    %8 = vector.load %arg4[%c0_8, %c0_9] : memref<32x32xf32, #tpu.memory_space<vmem>>, vector<32x32xf32>
    %cst_10 = arith.constant dense<0.000000e+00> : vector<8x32xf32>
    %9 = tpu.matmul %7, %8, %cst_10 {dimension_numbers = #tpu.dot_dimension_numbers<[1], [0], [0], [1], [0, 0, 1, 1], [], []>} : vector<8x32xf32>, vector<32x32xf32>, vector<8x32xf32> -> vector<8x32xf32>
    %c0_11 = arith.constant 0 : index
    %c0_12 = arith.constant 0 : index
    %10 = vector.load %arg5[%c0_11, %c0_12] : memref<1x32xf32, #tpu.memory_space<vmem>>, vector<1x32xf32>
    %11 = vector.broadcast %10 : vector<1x32xf32> to vector<8x32xf32>
    %12 = arith.addf %9, %11 : vector<8x32xf32>
    %cst_13 = arith.constant 0.000000e+00 : f32
    %13 = vector.broadcast %cst_13 : f32 to vector<8x32xf32>
    %14 = arith.maximumf %12, %13 : vector<8x32xf32>
    %c0_14 = arith.constant 0 : index
    %c0_15 = arith.constant 0 : index
    %c0_16 = arith.constant 0 : index
    %15 = vector.load %arg8[%c0_14, %c0_15, %c0_16] : memref<1x8x32xf32, #tpu.memory_space<vmem>>, vector<1x8x32xf32>
    %16 = vector.shape_cast %15 : vector<1x8x32xf32> to vector<8x32xf32>
    %17 = vector.shape_cast %14 : vector<8x32xf32> to vector<1x8x32xf32>
    tpu.vector_store %arg8[%c0_14, %c0_15, %c0_16], %17 {strides = array<i32>} : memref<1x8x32xf32, #tpu.memory_space<vmem>>, vector<1x8x32xf32>,
    %c0_17 = arith.constant 0 : index
    %c0_18 = arith.constant 0 : index
    %18 = vector.load %arg6[%c0_17, %c0_18] : memref<32x16xf32, #tpu.memory_space<vmem>>, vector<32x16xf32>
    %cst_19 = arith.constant dense<0.000000e+00> : vector<8x16xf32>
    %19 = tpu.matmul %14, %18, %cst_19 {dimension_numbers = #tpu.dot_dimension_numbers<[1], [0], [0], [1], [0, 0, 1, 1], [], []>} : vector<8x32xf32>, vector<32x16xf32>, vector<8x16xf32> -> vector<8x16xf32>
    %c0_20 = arith.constant 0 : index
    %c0_21 = arith.constant 0 : index
    %c0_22 = arith.constant 0 : index
    %20 = vector.load %arg9[%c0_20, %c0_21, %c0_22] : memref<1x8x16xf32, #tpu.memory_space<vmem>>, vector<1x8x16xf32>
    %21 = vector.shape_cast %20 : vector<1x8x16xf32> to vector<8x16xf32>
    %22 = vector.shape_cast %19 : vector<8x16xf32> to vector<1x8x16xf32>
    tpu.vector_store %arg9[%c0_20, %c0_21, %c0_22], %22 {strides = array<i32>} : memref<1x8x16xf32, #tpu.memory_space<vmem>>, vector<1x8x16xf32>,
    %c0_23 = arith.constant 0 : index
    %c0_24 = arith.constant 0 : index
    %23 = vector.load %arg7[%c0_23, %c0_24] : memref<32x16xf32, #tpu.memory_space<vmem>>, vector<32x16xf32>
    %cst_25 = arith.constant dense<0.000000e+00> : vector<8x16xf32>
    %24 = tpu.matmul %14, %23, %cst_25 {dimension_numbers = #tpu.dot_dimension_numbers<[1], [0], [0], [1], [0, 0, 1, 1], [], []>} : vector<8x32xf32>, vector<32x16xf32>, vector<8x16xf32> -> vector<8x16xf32>
    %c0_26 = arith.constant 0 : index
    %c0_27 = arith.constant 0 : index
    %c0_28 = arith.constant 0 : index
    %25 = vector.load %arg10[%c0_26, %c0_27, %c0_28] : memref<1x8x16xf32, #tpu.memory_space<vmem>>, vector<1x8x16xf32>
    %26 = vector.shape_cast %25 : vector<1x8x16xf32> to vector<8x16xf32>
    %27 = vector.shape_cast %24 : vector<8x16xf32> to vector<1x8x16xf32>
    tpu.vector_store %arg10[%c0_26, %c0_27, %c0_28], %27 {strides = array<i32>} : memref<1x8x16xf32, #tpu.memory_space<vmem>>, vector<1x8x16xf32>,
    return
  }
  func.func @transform_0(%arg0: i32, %arg1: i32) -> (i32, i32, i32, i32) {
    %c0_i32 = arith.constant 0 : i32
    %c0_i32_0 = arith.constant 0 : i32
    %c0_i32_1 = arith.constant 0 : i32
    return %arg0, %arg1, %c0_i32, %c0_i32_0 : i32, i32, i32, i32
  }
  func.func @transform_1(%arg0: i32, %arg1: i32) -> (i32, i32, i32) {
    %c0_i32 = arith.constant 0 : i32
    %c0_i32_0 = arith.constant 0 : i32
    %c0_i32_1 = arith.constant 0 : i32
    return %arg0, %c0_i32, %c0_i32_0 : i32, i32, i32
  }
  func.func @transform_2(%arg0: i32, %arg1: i32) -> (i32, i32) {
    %c0_i32 = arith.constant 0 : i32
    %c0_i32_0 = arith.constant 0 : i32
    %c0_i32_1 = arith.constant 0 : i32
    return %c0_i32, %c0_i32_0 : i32, i32
  }
  func.func @transform_3(%arg0: i32, %arg1: i32) -> (i32, i32) {
    %c0_i32 = arith.constant 0 : i32
    %c0_i32_0 = arith.constant 0 : i32
    %c0_i32_1 = arith.constant 0 : i32
    return %c0_i32, %c0_i32_0 : i32, i32
  }
  func.func @transform_4(%arg0: i32, %arg1: i32) -> (i32, i32) {
    %c0_i32 = arith.constant 0 : i32
    %c0_i32_0 = arith.constant 0 : i32
    %c0_i32_1 = arith.constant 0 : i32
    return %c0_i32, %c0_i32_0 : i32, i32
  }
  func.func @transform_5(%arg0: i32, %arg1: i32) -> (i32, i32) {
    %c0_i32 = arith.constant 0 : i32
    %c0_i32_0 = arith.constant 0 : i32
    %c0_i32_1 = arith.constant 0 : i32
    return %c0_i32, %c0_i32_0 : i32, i32
  }
  func.func @transform_6(%arg0: i32, %arg1: i32) -> (i32, i32, i32) {
    %c0_i32 = arith.constant 0 : i32
    %c0_i32_0 = arith.constant 0 : i32
    return %arg0, %arg1, %c0_i32 : i32, i32, i32
  }
  func.func @transform_7(%arg0: i32, %arg1: i32) -> (i32, i32, i32) {
    %c0_i32 = arith.constant 0 : i32
    %c0_i32_0 = arith.constant 0 : i32
    return %arg0, %arg1, %c0_i32 : i32, i32, i32
  }
  func.func @transform_8(%arg0: i32, %arg1: i32) -> (i32, i32, i32) {
    %c0_i32 = arith.constant 0 : i32
    %c0_i32_0 = arith.constant 0 : i32
    return %arg0, %arg1, %c0_i32 : i32, i32, i32
  }
}

</mosaic_0001>

<llo_original>
// kernel: tpu_custom_call.1
$region0: #{tpu_custom_call.1}
  #allocation0 [shape = 'u32[]', space=smem, size = 0x4, offset = 0x4, fixed_abs, tag = 'smem constant byte address 0x4 - core index']
  #allocation1 [shape = 'u32[144,128]{1,0:T(1,128)}', space=vmem, size = 0x12000, scoped, tag = 'internal scratch']
  %s0 = inlined_call_operand.hbm [shape: f32[2,8,8,16], index: 0, kind: input, shape index: {}]
  %s1 = inlined_call_operand.vmem [shape: f32[2,8,32], index: 1, kind: input, shape index: {}]
  %s2 = inlined_call_operand.vmem [shape: f32[32,32], index: 2, kind: input, shape index: {}]
  %s3 = inlined_call_operand.vmem [shape: f32[1,32], index: 3, kind: input, shape index: {}]
  %s4 = inlined_call_operand.vmem [shape: f32[32,16], index: 4, kind: input, shape index: {}]
  %s5 = inlined_call_operand.vmem [shape: f32[32,16], index: 5, kind: input, shape index: {}]
  %s6 = inlined_call_operand.hbm [shape: f32[2,8,32], index: 6, kind: output, shape index: {0}]
  %s7 = inlined_call_operand.hbm [shape: f32[2,8,16], index: 7, kind: output, shape index: {1}]
  %s8 = inlined_call_operand.hbm [shape: f32[2,8,16], index: 8, kind: output, shape index: {2}]
  %9 = xla_tuple %s6, %s7, %s8
  %s10 = sld [smem:[#allocation0]]
  $region77: #{tpu_custom_call.1} parent=0
    _
  %s12 = ssub.s32 1, %s10
  %s13 = scalar_select 0, %s12, %s10
  $region1: #{tpu_custom_call.1} parent=0
    #allocation2 [shape = 'u8[65536]{0}', space=vmem, size = 0x10000, scoped, tag = 'input window, operand 0']
    #allocation3 [shape = 's32[2]{0}', space=sflag, size = 0x8, scoped, tag = 'scoped memory for tpu_custom_call.1']
    #allocation4 [shape = 's32[2]{0}', space=sflag, size = 0x8, scoped, tag = 'scoped memory for tpu_custom_call.1']
    #allocation5 [shape = 'u8[8192]{0}', space=vmem, size = 0x2000, scoped, tag = 'output window, operand 0']
    #allocation6 [shape = 'u8[8192]{0}', space=vmem, size = 0x2000, scoped, tag = 'output window, operand 1']
    #allocation7 [shape = 's32[2]{0}', space=sflag, size = 0x8, scoped, tag = 'scoped memory for tpu_custom_call.1']
    #allocation8 [shape = 'u8[8192]{0}', space=vmem, size = 0x2000, scoped, tag = 'output window, operand 2']
    %14 = vsyncpa [#allocation3], 0
    %s15 = scalar_lea.sflag [#allocation3], 1
    %16 = vsyncpa %s15, 0
    %17 = vsyncpa [#allocation4], 0
    %s18 = scalar_lea.sflag [#allocation4], 1
    %19 = vsyncpa %s18, 0
    %20 = vsyncpa [#allocation7], 0
    %s21 = scalar_lea.sflag [#allocation7], 1
    %22 = vsyncpa %s21, 0
    loop: start=0, step=1, limit=4
    $region2: #{tpu_custom_call.1} parent=1 // loop_pre_header
      _
    $region3: #{tpu_custom_call.1} parent=1 // loop_header
      %s24 = sphi 0, %s28
      %p25 = scmp.ge.s32.totalorder %s24, 4
      %s31 = sphi 0, %s43
      %s32 = sphi 0, %s39
      %s33 = sphi 0, %s31
      %s34 = sphi 0, %s32
      %s35 = sphi 0, %s33
      %s36 = sphi 0, %s34
      %s48 = sphi 0, %s50
      %s51 = sphi 0, %s48
      %s52 = sphi 0, %s51
      %s68 = sphi 0, %s52
      %s74 = sphi 0, %s76
      %s77 = sphi 0, %s74
      %s78 = sphi 0, %s77
      %s94 = sphi 0, %s78
      %s98 = sphi 0, %s98
      %s100 = sphi 0, %s98
      %s101 = sphi 0, %s100
      %s115 = sphi 0, %s101
      %s119 = sphi 0, %s119
      %s121 = sphi 0, %s119
      %s122 = sphi 0, %s121
      %s136 = sphi 0, %s122
      %s140 = sphi 0, %s140
      %s142 = sphi 0, %s140
      %s143 = sphi 0, %s142
      %s157 = sphi 0, %s143
      %s161 = sphi 0, %s161
      %s163 = sphi 0, %s161
      %s164 = sphi 0, %s163
      %s178 = sphi 0, %s164
      %s186 = sphi 0, %s188
      %s189 = sphi 0, %s186
      %s190 = sphi 0, %s189
      %s206 = sphi 0, %s190
      %s214 = sphi 0, %s216
      %s217 = sphi 0, %s214
      %s218 = sphi 0, %s217
      %s234 = sphi 0, %s218
      %s242 = sphi 0, %s244
      %s245 = sphi 0, %s242
      %s246 = sphi 0, %s245
      %s262 = sphi 0, %s246
    $region4: #{tpu_custom_call.1} parent=1 // loop_header_branch
      %27 = sbr.rel (%p25) target = $region8
    $region5: #{tpu_custom_call.1} parent=1 // loop_body
      %s29 = ssub.s32 %s24, 1
      %s30 = ssub.s32 %s24, 2
      %s37 = sadd.s32 1, %s32
      %p38 = scmp.ge.s32.totalorder %s37, 1
      %s39 = scalar_select %p38, 0, %s37
      %s40 = sadd.s32 1, %s31
      %s41 = scalar_select %p38, %s40, %s31
      %p42 = scmp.ge.s32.totalorder %s41, 2
      %s43 = scalar_select %p42, 0, %s41
      %s44 = ssub.s32 %s31, %s43
      %s45 = ssub.s32 %s32, %s39
      %s46 = sor.u32 %s44, %s45
      %p47 = scmp.eq.s32.totalorder %s46, 0
      %s49 = sadd.s32 %s48, 1
      %s50 = scalar_select %p47, %s48, %s49
      %p53 = pneg %p47
      %p54 = scmp.eq.s32.totalorder %s24, 1
      %p55 = por %p53, %p54
      %p56 = scmp.ne.s32.totalorder %s48, %s51
      %p57 = scmp.eq.s32.totalorder %s24, 0
      %p58 = por %p56, %p57
      %p59 = scmp.ne.s32.totalorder %s48, %s51
      %p60 = scmp.eq.s32.totalorder %s29, 1
      %p61 = por %p59, %p60
      %p62 = scmp.ne.s32.totalorder %s51, %s52
      %p63 = scmp.eq.s32.totalorder %s29, 0
      %p64 = por %p62, %p63
      %p65 = scmp.ne.s32.totalorder %s51, %s52
      %p66 = scmp.eq.s32.totalorder %s30, 1
      %p67 = por %p65, %p66
      %p69 = scmp.ne.s32.totalorder %s52, %s68
      %p70 = scmp.eq.s32.totalorder %s30, 0
      %p71 = por %p69, %p70
      %s72 = ssub.s32 %s31, %s43
      %p73 = scmp.eq.s32.totalorder %s72, 0
      %s75 = sadd.s32 %s74, 1
      %s76 = scalar_select %p73, %s74, %s75
      %p79 = pneg %p73
      %p80 = scmp.eq.s32.totalorder %s24, 1
      %p81 = por %p79, %p80
      %p82 = scmp.ne.s32.totalorder %s74, %s77
      %p83 = scmp.eq.s32.totalorder %s24, 0
      %p84 = por %p82, %p83
      %p85 = scmp.ne.s32.totalorder %s74, %s77
      %p86 = scmp.eq.s32.totalorder %s29, 1
      %p87 = por %p85, %p86
      %p88 = scmp.ne.s32.totalorder %s77, %s78
      %p89 = scmp.eq.s32.totalorder %s29, 0
      %p90 = por %p88, %p89
      %p91 = scmp.ne.s32.totalorder %s77, %s78
      %p92 = scmp.eq.s32.totalorder %s30, 1
      %p93 = por %p91, %p92
      %p95 = scmp.ne.s32.totalorder %s78, %s94
      %p96 = scmp.eq.s32.totalorder %s30, 0
      %p97 = por %p95, %p96
      %s99 = sadd.s32 %s98, 1
      %p102 = scmp.eq.s32.totalorder %s24, 1
      %p103 = scmp.ne.s32.totalorder %s98, %s100
      %p104 = scmp.eq.s32.totalorder %s24, 0
      %p105 = por %p103, %p104
      %p106 = scmp.ne.s32.totalorder %s98, %s100
      %p107 = scmp.eq.s32.totalorder %s29, 1
      %p108 = por %p106, %p107
      %p109 = scmp.ne.s32.totalorder %s100, %s101
      %p110 = scmp.eq.s32.totalorder %s29, 0
      %p111 = por %p109, %p110
      %p112 = scmp.ne.s32.totalorder %s100, %s101
      %p113 = scmp.eq.s32.totalorder %s30, 1
      %p114 = por %p112, %p113
      %p116 = scmp.ne.s32.totalorder %s101, %s115
      %p117 = scmp.eq.s32.totalorder %s30, 0
      %p118 = por %p116, %p117
      %s120 = sadd.s32 %s119, 1
      %p123 = scmp.eq.s32.totalorder %s24, 1
      %p124 = scmp.ne.s32.totalorder %s119, %s121
      %p125 = scmp.eq.s32.totalorder %s24, 0
      %p126 = por %p124, %p125
      %p127 = scmp.ne.s32.totalorder %s119, %s121
      %p128 = scmp.eq.s32.totalorder %s29, 1
      %p129 = por %p127, %p128
      %p130 = scmp.ne.s32.totalorder %s121, %s122
      %p131 = scmp.eq.s32.totalorder %s29, 0
      %p132 = por %p130, %p131
      %p133 = scmp.ne.s32.totalorder %s121, %s122
      %p134 = scmp.eq.s32.totalorder %s30, 1
      %p135 = por %p133, %p134
      %p137 = scmp.ne.s32.totalorder %s122, %s136
      %p138 = scmp.eq.s32.totalorder %s30, 0
      %p139 = por %p137, %p138
      %s141 = sadd.s32 %s140, 1
      %p144 = scmp.eq.s32.totalorder %s24, 1
      %p145 = scmp.ne.s32.totalorder %s140, %s142
      %p146 = scmp.eq.s32.totalorder %s24, 0
      %p147 = por %p145, %p146
      %p148 = scmp.ne.s32.totalorder %s140, %s142
      %p149 = scmp.eq.s32.totalorder %s29, 1
      %p150 = por %p148, %p149
      %p151 = scmp.ne.s32.totalorder %s142, %s143
      %p152 = scmp.eq.s32.totalorder %s29, 0
      %p153 = por %p151, %p152
      %p154 = scmp.ne.s32.totalorder %s142, %s143
      %p155 = scmp.eq.s32.totalorder %s30, 1
      %p156 = por %p154, %p155
      %p158 = scmp.ne.s32.totalorder %s143, %s157
      %p159 = scmp.eq.s32.totalorder %s30, 0
      %p160 = por %p158, %p159
      %s162 = sadd.s32 %s161, 1
      %p165 = scmp.eq.s32.totalorder %s24, 1
      %p166 = scmp.ne.s32.totalorder %s161, %s163
      %p167 = scmp.eq.s32.totalorder %s24, 0
      %p168 = por %p166, %p167
      %p169 = scmp.ne.s32.totalorder %s161, %s163
      %p170 = scmp.eq.s32.totalorder %s29, 1
      %p171 = por %p169, %p170
      %p172 = scmp.ne.s32.totalorder %s163, %s164
      %p173 = scmp.eq.s32.totalorder %s29, 0
      %p174 = por %p172, %p173
      %p175 = scmp.ne.s32.totalorder %s163, %s164
      %p176 = scmp.eq.s32.totalorder %s30, 1
      %p177 = por %p175, %p176
      %p179 = scmp.ne.s32.totalorder %s164, %s178
      %p180 = scmp.eq.s32.totalorder %s30, 0
      %p181 = por %p179, %p180
      %s182 = ssub.s32 %s31, %s43
      %s183 = ssub.s32 %s32, %s39
      %s184 = sor.u32 %s182, %s183
      %p185 = scmp.eq.s32.totalorder %s184, 0
      %s187 = sadd.s32 %s186, 1
      %s188 = scalar_select %p185, %s186, %s187
      %p191 = pneg %p185
      %p192 = scmp.eq.s32.totalorder %s24, 1
      %p193 = por %p191, %p192
      %p194 = scmp.ne.s32.totalorder %s186, %s189
      %p195 = scmp.eq.s32.totalorder %s24, 0
      %p196 = por %p194, %p195
      %p197 = scmp.ne.s32.totalorder %s186, %s189
      %p198 = scmp.eq.s32.totalorder %s29, 1
      %p199 = por %p197, %p198
      %p200 = scmp.ne.s32.totalorder %s189, %s190
      %p201 = scmp.eq.s32.totalorder %s29, 0
      %p202 = por %p200, %p201
      %p203 = scmp.ne.s32.totalorder %s189, %s190
      %p204 = scmp.eq.s32.totalorder %s30, 1
      %p205 = por %p203, %p204
      %p207 = scmp.ne.s32.totalorder %s190, %s206
      %p208 = scmp.eq.s32.totalorder %s30, 0
      %p209 = por %p207, %p208
      %s210 = ssub.s32 %s31, %s43
      %s211 = ssub.s32 %s32, %s39
      %s212 = sor.u32 %s210, %s211
      %p213 = scmp.eq.s32.totalorder %s212, 0
      %s215 = sadd.s32 %s214, 1
      %s216 = scalar_select %p213, %s214, %s215
      %p219 = pneg %p213
      %p220 = scmp.eq.s32.totalorder %s24, 1
      %p221 = por %p219, %p220
      %p222 = scmp.ne.s32.totalorder %s214, %s217
      %p223 = scmp.eq.s32.totalorder %s24, 0
      %p224 = por %p222, %p223
      %p225 = scmp.ne.s32.totalorder %s214, %s217
      %p226 = scmp.eq.s32.totalorder %s29, 1
      %p227 = por %p225, %p226
      %p228 = scmp.ne.s32.totalorder %s217, %s218
      %p229 = scmp.eq.s32.totalorder %s29, 0
      %p230 = por %p228, %p229
      %p231 = scmp.ne.s32.totalorder %s217, %s218
      %p232 = scmp.eq.s32.totalorder %s30, 1
      %p233 = por %p231, %p232
      %p235 = scmp.ne.s32.totalorder %s218, %s234
      %p236 = scmp.eq.s32.totalorder %s30, 0
      %p237 = por %p235, %p236
      %s238 = ssub.s32 %s31, %s43
      %s239 = ssub.s32 %s32, %s39
      %s240 = sor.u32 %s238, %s239
      %p241 = scmp.eq.s32.totalorder %s240, 0
      %s243 = sadd.s32 %s242, 1
      %s244 = scalar_select %p241, %s242, %s243
      %p247 = pneg %p241
      %p248 = scmp.eq.s32.totalorder %s24, 1
      %p249 = por %p247, %p248
      %p250 = scmp.ne.s32.totalorder %s242, %s245
      %p251 = scmp.eq.s32.totalorder %s24, 0
      %p252 = por %p250, %p251
      %p253 = scmp.ne.s32.totalorder %s242, %s245
      %p254 = scmp.eq.s32.totalorder %s29, 1
      %p255 = por %p253, %p254
      %p256 = scmp.ne.s32.totalorder %s245, %s246
      %p257 = scmp.eq.s32.totalorder %s29, 0
      %p258 = por %p256, %p257
      %p259 = scmp.ne.s32.totalorder %s245, %s246
      %p260 = scmp.eq.s32.totalorder %s30, 1
      %p261 = por %p259, %p260
      %p263 = scmp.ne.s32.totalorder %s246, %s262
      %p264 = scmp.eq.s32.totalorder %s30, 0
      %p265 = por %p263, %p264
      %p266 = scmp.le.s32.totalorder 1, %s24
      %p267 = scmp.lt.s32.totalorder %s24, 3
      %p268 = pnand %p266, %p267
      %p269 = pneg %p268
      // Predicated region
      $region9: #{tpu_custom_call.1} parent=5 // pred_check
        _
      $region10: #{tpu_custom_call.1} parent=5 // pred_check_branch
        %271 = sbr.rel (%p268) target = $region12
      $region11: #{tpu_custom_call.1} parent=5 // pred_region
        %s272 = ssub.s32 %s24, 1
        // Predicated region
        $region13: #{tpu_custom_call.1} parent=11 // pred_check
          %p273 = pneg %p111
        $region14: #{tpu_custom_call.1} parent=11 // pred_check_branch
          %275 = sbr.rel (%p273) target = $region16
        $region15: #{tpu_custom_call.1} parent=11 // pred_region
          _
        $region16: #{tpu_custom_call.1} parent=11 // pred_fallthru
          _
        // Predicated region
        $region17: #{tpu_custom_call.1} parent=11 // pred_check
          %p276 = pneg %p132
        $region18: #{tpu_custom_call.1} parent=11 // pred_check_branch
          %278 = sbr.rel (%p276) target = $region20
        $region19: #{tpu_custom_call.1} parent=11 // pred_region
          _
        $region20: #{tpu_custom_call.1} parent=11 // pred_fallthru
          _
        // Predicated region
        $region21: #{tpu_custom_call.1} parent=11 // pred_check
          %p279 = pneg %p153
        $region22: #{tpu_custom_call.1} parent=11 // pred_check_branch
          %281 = sbr.rel (%p279) target = $region24
        $region23: #{tpu_custom_call.1} parent=11 // pred_region
          _
        $region24: #{tpu_custom_call.1} parent=11 // pred_fallthru
          _
        // Predicated region
        $region25: #{tpu_custom_call.1} parent=11 // pred_check
          %p282 = pneg %p174
        $region26: #{tpu_custom_call.1} parent=11 // pred_check_branch
          %284 = sbr.rel (%p282) target = $region28
        $region27: #{tpu_custom_call.1} parent=11 // pred_region
          _
        $region28: #{tpu_custom_call.1} parent=11 // pred_fallthru
          _
      $region12: #{tpu_custom_call.1} parent=5 // pred_fallthru
        _
      %p285 = scmp.lt.s32.totalorder %s24, 2
      // Predicated region
      $region29: #{tpu_custom_call.1} parent=5 // pred_check
        %p286 = pneg %p285
      $region30: #{tpu_custom_call.1} parent=5 // pred_check_branch
        %288 = sbr.rel (%p286) target = $region32
      $region31: #{tpu_custom_call.1} parent=5 // pred_region
        // Predicated region
        $region33: #{tpu_custom_call.1} parent=31 // pred_check
          %p289 = pneg %p58
        $region34: #{tpu_custom_call.1} parent=31 // pred_check_branch
          %291 = sbr.rel (%p289) target = $region36
        $region35: #{tpu_custom_call.1} parent=31 // pred_region
          %s292 = sand.u32 %s48, 1
          %s293 = scalar_lea.sflag [#allocation3], %s292
          %s294 = sand.u32 %s48, 1
          %s295 = smul.addr %s294, 64
          %s296 = scalar_lea.vmem [#allocation2], %s295
          %s297 = smul.u32 8, %s32
          %s299 = ssub.s32 1024, 1024
          %300 = vsyncadd %s293, %s299
          %s301 = smul.addr %s31, 8
          %s302 = sadd.s32 %s297, %s301
          %s303 = smul.addr %s302, 128
          %s304 = scalar_lea.hbm %s0, %s303
          %s305 = sshll.u32 %s296, 4
          %s306 = int_to_ptr.vmem [resolvable:$true] %s305
          %311 = dma.hbm_to_vmem [thread:$0]  %s304, 1024, %s306, %s293, 128, 128, 8
        $region36: #{tpu_custom_call.1} parent=31 // pred_fallthru
          _
        // Predicated region
        $region37: #{tpu_custom_call.1} parent=31 // pred_check
          %p312 = pneg %p84
        $region38: #{tpu_custom_call.1} parent=31 // pred_check_branch
          %314 = sbr.rel (%p312) target = $region40
        $region39: #{tpu_custom_call.1} parent=31 // pred_region
          %p315 = scmp.lt.s32.totalorder %s31, 1
          %s316 = scalar_select %p315, %s31, 1
          %s317 = smul.addr %s316, 8
          %s318 = scalar_lea.vmem %s1, %s317
        $region40: #{tpu_custom_call.1} parent=31 // pred_fallthru
          _
      $region32: #{tpu_custom_call.1} parent=5 // pred_fallthru
        _
      %p319 = scmp.le.s32.totalorder 1, %s24
      %p320 = scmp.lt.s32.totalorder %s24, 3
      %p321 = pnand %p319, %p320
      %p322 = pneg %p321
      // Predicated region
      $region41: #{tpu_custom_call.1} parent=5 // pred_check
        _
      $region42: #{tpu_custom_call.1} parent=5 // pred_check_branch
        %324 = sbr.rel (%p321) target = $region44
      $region43: #{tpu_custom_call.1} parent=5 // pred_region
        %s325 = ssub.s32 %s24, 1
        %s326 = sand.u32 %s51, 1
        %s327 = scalar_lea.sflag [#allocation3], %s326
        %s328 = sand.u32 %s51, 1
        %s329 = smul.addr %s328, 64
        %s330 = scalar_lea.vmem [#allocation2], %s329
        // Predicated region
        $region45: #{tpu_custom_call.1} parent=43 // pred_check
          %p331 = pneg %p64
        $region46: #{tpu_custom_call.1} parent=43 // pred_check_branch
          %333 = sbr.rel (%p331) target = $region48
        $region47: #{tpu_custom_call.1} parent=43 // pred_region
          %334 = dma.done %s327, 1024
        $region48: #{tpu_custom_call.1} parent=43 // pred_fallthru
          _
        %s335 = sand.u32 %s51, 1
        %s336 = scalar_lea.sflag [#allocation3], %s335
        %s337 = sand.u32 %s51, 1
        %s338 = smul.addr %s337, 64
        %s339 = scalar_lea.vmem [#allocation2], %s338
        %p340 = pneg %p64
        %p341 = pneg %p61
        %p342 = scmp.lt.s32.totalorder %s33, 1
        %s343 = scalar_select %p342, %s33, 1
        %s344 = smul.addr %s343, 8
        %s345 = scalar_lea.vmem %s1, %s344
        %p346 = pneg %p90
        %p347 = pneg %p87
        %p348 = pneg %p111
        %p349 = pneg %p108
        %p350 = pneg %p132
        %p351 = pneg %p129
        %p352 = pneg %p153
        %p353 = pneg %p150
        %p354 = pneg %p174
        %p355 = pneg %p171
        %p356 = pneg %p202
        %p357 = pneg %p199
        %s358 = sand.u32 %s189, 1
        %s359 = scalar_lea.sflag [#allocation4], %s358
        %s360 = sand.u32 %s189, 1
        %s361 = smul.addr %s360, 8
        %s362 = scalar_lea.vmem [#allocation5], %s361
        %p363 = pneg %p230
        %p364 = pneg %p227
        %s365 = sand.u32 %s29, 1
        %s366 = scalar_lea.sflag [#allocation7], %s365
        %s367 = sand.u32 %s217, 1
        %s368 = smul.addr %s367, 8
        %s369 = scalar_lea.vmem [#allocation6], %s368
        %p370 = pneg %p258
        %p371 = pneg %p255
        %s372 = sand.u32 %s29, 1
        %s373 = scalar_lea.sflag [#allocation7], %s372
        %s374 = sand.u32 %s245, 1
        %s375 = smul.addr %s374, 8
        %s376 = scalar_lea.vmem [#allocation8], %s375
        %s377 = smul.u32 8, %s34
        %p378 = scmp.lt.s32.totalorder %s33, 1
        %s379 = scalar_select %p378, %s33, 1
        %s380 = smul.addr %s379, 8
        %s381 = scalar_lea.vmem %s1, %s380
        %v382 = vld [vmem:[%s330] sm:$0xff]
        %v383 = vld [vmem:[%s330 + $0x8] sm:$0xff]
        %v384 = vld [vmem:[%s330 + $0x10] sm:$0xff]
        %v385 = vld [vmem:[%s330 + $0x18] sm:$0xff]
        %v386 = vld [vmem:[%s330 + $0x20] sm:$0xff]
        %v387 = vld [vmem:[%s330 + $0x28] sm:$0xff]
        %v388 = vld [vmem:[%s330 + $0x30] sm:$0xff]
        %v389 = vld [vmem:[%s330 + $0x38] sm:$0xff]
        %v390 = vld [vmem:[%s381] sm:$0xff]
        %vm391 = vcmask 130048
        %v392 = vsel %vm391, %v382, 0.0
        %393 = vadd.xlane.f32.xlu0 %v392
        %v394 = vpop.xlane.xlu0 %393
        %v395 = vsel %vm391, %v383, 0.0
        %396 = vadd.xlane.f32.xlu0 %v395
        %v397 = vpop.xlane.xlu0 %396
        %v398 = vsel %vm391, %v384, 0.0
        %399 = vadd.xlane.f32.xlu0 %v398
        %v400 = vpop.xlane.xlu0 %399
        %v401 = vsel %vm391, %v385, 0.0
        %402 = vadd.xlane.f32.xlu0 %v401
        %v403 = vpop.xlane.xlu0 %402
        %v404 = vsel %vm391, %v386, 0.0
        %405 = vadd.xlane.f32.xlu0 %v404
        %v406 = vpop.xlane.xlu0 %405
        %v407 = vsel %vm391, %v387, 0.0
        %408 = vadd.xlane.f32.xlu0 %v407
        %v409 = vpop.xlane.xlu0 %408
        %v410 = vsel %vm391, %v388, 0.0
        %411 = vadd.xlane.f32.xlu0 %v410
        %v412 = vpop.xlane.xlu0 %411
        %v413 = vsel %vm391, %v389, 0.0
        %414 = vadd.xlane.f32.xlu0 %v413
        %v415 = vpop.xlane.xlu0 %414
        %v416 = vrcp.pop 16.0
        %v417 = vmul.f32 %v394, %v416
        %v418 = vmul.f32 %v397, %v416
        %v419 = vmul.f32 %v400, %v416
        %v420 = vmul.f32 %v403, %v416
        %v421 = vmul.f32 %v406, %v416
        %v422 = vmul.f32 %v409, %v416
        %v423 = vmul.f32 %v412, %v416
        %v424 = vmul.f32 %v415, %v416
        %v433 = vlaneseq
        %v434 = vand.u32 %v433, 127
        %v435 = vlaneseq
        %v436 = vshrl.u32 %v435, 7
        %v437 = vsub.s32 %v434, %v436
        %v438 = vrot.slane %v417, %v437
        %v439 = vlaneseq
        %v440 = vshrl.u32 %v439, 7
        %v441 = vsub.s32 %v434, %v440
        %v442 = vrot.slane %v418, %v441
        %v443 = vlaneseq
        %v444 = vshrl.u32 %v443, 7
        %v445 = vsub.s32 %v434, %v444
        %v446 = vrot.slane %v419, %v445
        %v447 = vlaneseq
        %v448 = vshrl.u32 %v447, 7
        %v449 = vsub.s32 %v434, %v448
        %v450 = vrot.slane %v420, %v449
        %v451 = vlaneseq
        %v452 = vshrl.u32 %v451, 7
        %v453 = vsub.s32 %v434, %v452
        %v454 = vrot.slane %v421, %v453
        %v455 = vlaneseq
        %v456 = vshrl.u32 %v455, 7
        %v457 = vsub.s32 %v434, %v456
        %v458 = vrot.slane %v422, %v457
        %v459 = vlaneseq
        %v460 = vshrl.u32 %v459, 7
        %v461 = vsub.s32 %v434, %v460
        %v462 = vrot.slane %v423, %v461
        %v463 = vlaneseq
        %v464 = vshrl.u32 %v463, 7
        %v465 = vsub.s32 %v434, %v464
        %v466 = vrot.slane %v424, %v465
        %vm467 = vcmask 1041409
        %v468 = vsel %vm467, %v442, %v438
        %vm469 = vcmask 1042434
        %v470 = vsel %vm469, %v446, %v468
        %vm471 = vcmask 1043459
        %v472 = vsel %vm471, %v450, %v470
        %vm473 = vcmask 1044484
        %v474 = vsel %vm473, %v454, %v472
        %vm475 = vcmask 1045509
        %v476 = vsel %vm475, %v458, %v474
        %vm477 = vcmask 1046534
        %v478 = vsel %vm477, %v462, %v476
        %vm479 = vcmask 1047559
        %v480 = vsel %vm479, %v466, %v478
        %vm481 = vcmask 64512
        %v482 = vsel %vm481, %v480, 0
        %484 = vmatprep.subr.mxu0 0.0
        %485 = vmatpush1.msra.mxu0 %v390
        %486 = vmatprep.subr.mxu0 0.0
        %487 = vmatpush1.msra.mxu0 0.0
        %488 = vmatprep.subr.mxu0 0.0
        %489 = vmatpush1.msra.mxu0 0.0
        %490 = vmatprep.subr.mxu0 0.0
        %491 = vmatpush1.msra.mxu0 0.0
        %492 = vmatprep.subr.mxu0 0.0
        %493 = vmatpush1.msra.mxu0 0.0
        %494 = vmatprep.subr.mxu0 0.0
        %495 = vmatpush1.msra.mxu0 0.0
        %496 = vmatprep.subr.mxu0 0.0
        %497 = vmatpush1.msra.mxu0 0.0
        %498 = vmatprep.subr.mxu0 0.0
        %499 = vmatpush1.msra.mxu0 0.0
        %500 = vmatprep.subr.mxu0 0.0
        %501 = vmatpush1.msra.mxu0 0.0
        %502 = vmatprep.subr.mxu0 0.0
        %503 = vmatpush1.msra.mxu0 0.0
        %504 = vmatprep.subr.mxu0 0.0
        %505 = vmatpush1.msra.mxu0 0.0
        %506 = vmatprep.subr.mxu0 0.0
        %507 = vmatpush1.msra.mxu0 0.0
        %508 = vmatprep.subr.mxu0 0.0
        %509 = vmatpush1.msra.mxu0 0.0
        %510 = vmatprep.subr.mxu0 0.0
        %511 = vmatpush1.msra.mxu0 0.0
        %512 = vmatprep.subr.mxu0 0.0
        %513 = vmatpush1.msra.mxu0 0.0
        %514 = vmatprep.subr.mxu0 0.0
        %515 = vmatpush1.msra.mxu0 0.0
        %516 = vmatprep.subr.mxu0 0.0
        %517 = vmatpush1.msra.mxu0 0.0
        %518 = vmatprep.subr.mxu0 0.0
        %519 = vmatpush1.msra.mxu0 0.0
        %520 = vmatprep.subr.mxu0 0.0
        %521 = vmatpush1.msra.mxu0 0.0
        %522 = vmatprep.subr.mxu0 0.0
        %523 = vmatpush1.msra.mxu0 0.0
        %524 = vmatprep.subr.mxu0 0.0
        %525 = vmatpush1.msra.mxu0 0.0
        %526 = vmatprep.subr.mxu0 0.0
        %527 = vmatpush1.msra.mxu0 0.0
        %528 = vmatprep.subr.mxu0 0.0
        %529 = vmatpush1.msra.mxu0 0.0
        %530 = vmatprep.subr.mxu0 0.0
        %531 = vmatpush1.msra.mxu0 0.0
        %532 = vmatprep.subr.mxu0 0.0
        %533 = vmatpush1.msra.mxu0 0.0
        %534 = vmatprep.subr.mxu0 0.0
        %535 = vmatpush1.msra.mxu0 0.0
        %536 = vmatprep.subr.mxu0 0.0
        %537 = vmatpush1.msra.mxu0 0.0
        %538 = vmatprep.subr.mxu0 0.0
        %539 = vmatpush1.msra.mxu0 0.0
        %540 = vmatprep.subr.mxu0 0.0
        %541 = vmatpush1.msra.mxu0 0.0
        %542 = vmatprep.subr.mxu0 0.0
        %543 = vmatpush1.msra.mxu0 0.0
        %544 = vmatprep.subr.mxu0 0.0
        %545 = vmatpush1.msra.mxu0 0.0
        %546 = vmatprep.subr.mxu0 0.0
        %547 = vmatpush1.msra.mxu0 0.0
        %548 = vmatprep.mubr.f32.mxu0 0.0
        %549 = vmatmul.mubr.f32.gmra.mrb[0].mxu0 %v482
        %v550 = vpop.f32.mrb[0].mxu0
        %v551 = vadd.f32 0.0, %v550
        %v552 = vpop.f32.mrb[0].mxu0
        %553 = vdwg.mxu0
        %v554 = vld [vmem:[%s2] sm:$0xff]
        %v555 = vld [vmem:[%s2 + $0x8] sm:$0xff]
        %v556 = vld [vmem:[%s2 + $0x10] sm:$0xff]
        %v557 = vld [vmem:[%s2 + $0x18] sm:$0xff]
        %v558 = vld [vmem:[%s3] sm:$0x1]
        %v560 = vlaneseq
        %v561 = vshrl.u32 %v560, 7
        %v562 = vsub.s32 0, %v561
        %v563 = vrot.slane %v558, %v562
        %vm565 = vcmask 261120
        %v567 = vsel %vm565, %v551, 0
        %569 = vmatprep.subr.mxu0 0.0
        %570 = vmatpush1.msra.mxu0 %v554
        %571 = vmatprep.subr.mxu0 0.0
        %572 = vmatpush1.msra.mxu0 %v555
        %573 = vmatprep.subr.mxu0 0.0
        %574 = vmatpush1.msra.mxu0 %v556
        %575 = vmatprep.subr.mxu0 0.0
        %576 = vmatpush1.msra.mxu0 %v557
        %577 = vmatprep.subr.mxu0 0.0
        %578 = vmatpush1.msra.mxu0 0.0
        %579 = vmatprep.subr.mxu0 0.0
        %580 = vmatpush1.msra.mxu0 0.0
        %581 = vmatprep.subr.mxu0 0.0
        %582 = vmatpush1.msra.mxu0 0.0
        %583 = vmatprep.subr.mxu0 0.0
        %584 = vmatpush1.msra.mxu0 0.0
        %585 = vmatprep.subr.mxu0 0.0
        %586 = vmatpush1.msra.mxu0 0.0
        %587 = vmatprep.subr.mxu0 0.0
        %588 = vmatpush1.msra.mxu0 0.0
        %589 = vmatprep.subr.mxu0 0.0
        %590 = vmatpush1.msra.mxu0 0.0
        %591 = vmatprep.subr.mxu0 0.0
        %592 = vmatpush1.msra.mxu0 0.0
        %593 = vmatprep.subr.mxu0 0.0
        %594 = vmatpush1.msra.mxu0 0.0
        %595 = vmatprep.subr.mxu0 0.0
        %596 = vmatpush1.msra.mxu0 0.0
        %597 = vmatprep.subr.mxu0 0.0
        %598 = vmatpush1.msra.mxu0 0.0
        %599 = vmatprep.subr.mxu0 0.0
        %600 = vmatpush1.msra.mxu0 0.0
        %601 = vmatprep.subr.mxu0 0.0
        %602 = vmatpush1.msra.mxu0 0.0
        %603 = vmatprep.subr.mxu0 0.0
        %604 = vmatpush1.msra.mxu0 0.0
        %605 = vmatprep.subr.mxu0 0.0
        %606 = vmatpush1.msra.mxu0 0.0
        %607 = vmatprep.subr.mxu0 0.0
        %608 = vmatpush1.msra.mxu0 0.0
        %609 = vmatprep.subr.mxu0 0.0
        %610 = vmatpush1.msra.mxu0 0.0
        %611 = vmatprep.subr.mxu0 0.0
        %612 = vmatpush1.msra.mxu0 0.0
        %613 = vmatprep.subr.mxu0 0.0
        %614 = vmatpush1.msra.mxu0 0.0
        %615 = vmatprep.subr.mxu0 0.0
        %616 = vmatpush1.msra.mxu0 0.0
        %617 = vmatprep.subr.mxu0 0.0
        %618 = vmatpush1.msra.mxu0 0.0
        %619 = vmatprep.subr.mxu0 0.0
        %620 = vmatpush1.msra.mxu0 0.0
        %621 = vmatprep.subr.mxu0 0.0
        %622 = vmatpush1.msra.mxu0 0.0
        %623 = vmatprep.subr.mxu0 0.0
        %624 = vmatpush1.msra.mxu0 0.0
        %625 = vmatprep.subr.mxu0 0.0
        %626 = vmatpush1.msra.mxu0 0.0
        %627 = vmatprep.subr.mxu0 0.0
        %628 = vmatpush1.msra.mxu0 0.0
        %629 = vmatprep.subr.mxu0 0.0
        %630 = vmatpush1.msra.mxu0 0.0
        %631 = vmatprep.subr.mxu0 0.0
        %632 = vmatpush1.msra.mxu0 0.0
        %633 = vmatprep.mubr.f32.mxu0 0.0
        %634 = vmatmul.mubr.f32.gmra.mrb[0].mxu0 %v567
        %v635 = vpop.f32.mrb[0].mxu0
        %v636 = vadd.f32 %v563, %v635
        %v637 = vpop.f32.mrb[0].mxu0
        %638 = vdwg.mxu0
        %v639 = vmax.f32 %v636, 0.0
        %640 = vst.msk [vmem:[%s362] sm:$0xff] %vm565, %v639
        %v641 = vld [vmem:[%s4] sm:$0xff]
        %v642 = vld [vmem:[%s4 + $0x8] sm:$0xff]
        %v643 = vld [vmem:[%s4 + $0x10] sm:$0xff]
        %v644 = vld [vmem:[%s4 + $0x18] sm:$0xff]
        %v646 = vsel %vm565, %v639, 0
        %648 = vmatprep.subr.mxu0 0.0
        %649 = vmatpush1.msra.mxu0 %v641
        %650 = vmatprep.subr.mxu0 0.0
        %651 = vmatpush1.msra.mxu0 %v642
        %652 = vmatprep.subr.mxu0 0.0
        %653 = vmatpush1.msra.mxu0 %v643
        %654 = vmatprep.subr.mxu0 0.0
        %655 = vmatpush1.msra.mxu0 %v644
        %656 = vmatprep.subr.mxu0 0.0
        %657 = vmatpush1.msra.mxu0 0.0
        %658 = vmatprep.subr.mxu0 0.0
        %659 = vmatpush1.msra.mxu0 0.0
        %660 = vmatprep.subr.mxu0 0.0
        %661 = vmatpush1.msra.mxu0 0.0
        %662 = vmatprep.subr.mxu0 0.0
        %663 = vmatpush1.msra.mxu0 0.0
        %664 = vmatprep.subr.mxu0 0.0
        %665 = vmatpush1.msra.mxu0 0.0
        %666 = vmatprep.subr.mxu0 0.0
        %667 = vmatpush1.msra.mxu0 0.0
        %668 = vmatprep.subr.mxu0 0.0
        %669 = vmatpush1.msra.mxu0 0.0
        %670 = vmatprep.subr.mxu0 0.0
        %671 = vmatpush1.msra.mxu0 0.0
        %672 = vmatprep.subr.mxu0 0.0
        %673 = vmatpush1.msra.mxu0 0.0
        %674 = vmatprep.subr.mxu0 0.0
        %675 = vmatpush1.msra.mxu0 0.0
        %676 = vmatprep.subr.mxu0 0.0
        %677 = vmatpush1.msra.mxu0 0.0
        %678 = vmatprep.subr.mxu0 0.0
        %679 = vmatpush1.msra.mxu0 0.0
        %680 = vmatprep.subr.mxu0 0.0
        %681 = vmatpush1.msra.mxu0 0.0
        %682 = vmatprep.subr.mxu0 0.0
        %683 = vmatpush1.msra.mxu0 0.0
        %684 = vmatprep.subr.mxu0 0.0
        %685 = vmatpush1.msra.mxu0 0.0
        %686 = vmatprep.subr.mxu0 0.0
        %687 = vmatpush1.msra.mxu0 0.0
        %688 = vmatprep.subr.mxu0 0.0
        %689 = vmatpush1.msra.mxu0 0.0
        %690 = vmatprep.subr.mxu0 0.0
        %691 = vmatpush1.msra.mxu0 0.0
        %692 = vmatprep.subr.mxu0 0.0
        %693 = vmatpush1.msra.mxu0 0.0
        %694 = vmatprep.subr.mxu0 0.0
        %695 = vmatpush1.msra.mxu0 0.0
        %696 = vmatprep.subr.mxu0 0.0
        %697 = vmatpush1.msra.mxu0 0.0
        %698 = vmatprep.subr.mxu0 0.0
        %699 = vmatpush1.msra.mxu0 0.0
        %700 = vmatprep.subr.mxu0 0.0
        %701 = vmatpush1.msra.mxu0 0.0
        %702 = vmatprep.subr.mxu0 0.0
        %703 = vmatpush1.msra.mxu0 0.0
        %704 = vmatprep.subr.mxu0 0.0
        %705 = vmatpush1.msra.mxu0 0.0
        %706 = vmatprep.subr.mxu0 0.0
        %707 = vmatpush1.msra.mxu0 0.0
        %708 = vmatprep.subr.mxu0 0.0
        %709 = vmatpush1.msra.mxu0 0.0
        %710 = vmatprep.subr.mxu0 0.0
        %711 = vmatpush1.msra.mxu0 0.0
        %712 = vmatprep.mubr.f32.mxu0 0.0
        %713 = vmatmul.mubr.f32.gmra.mrb[0].mxu0 %v646
        %v714 = vpop.f32.mrb[0].mxu0
        %v715 = vadd.f32 0.0, %v714
        %v716 = vpop.f32.mrb[0].mxu0
        %717 = vdwg.mxu0
        %718 = vst.msk [vmem:[%s369] sm:$0xff] %vm391, %v715
        %v719 = vld [vmem:[%s5] sm:$0xff]
        %v720 = vld [vmem:[%s5 + $0x8] sm:$0xff]
        %v721 = vld [vmem:[%s5 + $0x10] sm:$0xff]
        %v722 = vld [vmem:[%s5 + $0x18] sm:$0xff]
        %723 = vmatprep.subr.mxu0 0.0
        %724 = vmatpush1.msra.mxu0 %v719
        %725 = vmatprep.subr.mxu0 0.0
        %726 = vmatpush1.msra.mxu0 %v720
        %727 = vmatprep.subr.mxu0 0.0
        %728 = vmatpush1.msra.mxu0 %v721
        %729 = vmatprep.subr.mxu0 0.0
        %730 = vmatpush1.msra.mxu0 %v722
        %731 = vmatprep.subr.mxu0 0.0
        %732 = vmatpush1.msra.mxu0 0.0
        %733 = vmatprep.subr.mxu0 0.0
        %734 = vmatpush1.msra.mxu0 0.0
        %735 = vmatprep.subr.mxu0 0.0
        %736 = vmatpush1.msra.mxu0 0.0
        %737 = vmatprep.subr.mxu0 0.0
        %738 = vmatpush1.msra.mxu0 0.0
        %739 = vmatprep.subr.mxu0 0.0
        %740 = vmatpush1.msra.mxu0 0.0
        %741 = vmatprep.subr.mxu0 0.0
        %742 = vmatpush1.msra.mxu0 0.0
        %743 = vmatprep.subr.mxu0 0.0
        %744 = vmatpush1.msra.mxu0 0.0
        %745 = vmatprep.subr.mxu0 0.0
        %746 = vmatpush1.msra.mxu0 0.0
        %747 = vmatprep.subr.mxu0 0.0
        %748 = vmatpush1.msra.mxu0 0.0
        %749 = vmatprep.subr.mxu0 0.0
        %750 = vmatpush1.msra.mxu0 0.0
        %751 = vmatprep.subr.mxu0 0.0
        %752 = vmatpush1.msra.mxu0 0.0
        %753 = vmatprep.subr.mxu0 0.0
        %754 = vmatpush1.msra.mxu0 0.0
        %755 = vmatprep.subr.mxu0 0.0
        %756 = vmatpush1.msra.mxu0 0.0
        %757 = vmatprep.subr.mxu0 0.0
        %758 = vmatpush1.msra.mxu0 0.0
        %759 = vmatprep.subr.mxu0 0.0
        %760 = vmatpush1.msra.mxu0 0.0
        %761 = vmatprep.subr.mxu0 0.0
        %762 = vmatpush1.msra.mxu0 0.0
        %763 = vmatprep.subr.mxu0 0.0
        %764 = vmatpush1.msra.mxu0 0.0
        %765 = vmatprep.subr.mxu0 0.0
        %766 = vmatpush1.msra.mxu0 0.0
        %767 = vmatprep.subr.mxu0 0.0
        %768 = vmatpush1.msra.mxu0 0.0
        %769 = vmatprep.subr.mxu0 0.0
        %770 = vmatpush1.msra.mxu0 0.0
        %771 = vmatprep.subr.mxu0 0.0
        %772 = vmatpush1.msra.mxu0 0.0
        %773 = vmatprep.subr.mxu0 0.0
        %774 = vmatpush1.msra.mxu0 0.0
        %775 = vmatprep.subr.mxu0 0.0
        %776 = vmatpush1.msra.mxu0 0.0
        %777 = vmatprep.subr.mxu0 0.0
        %778 = vmatpush1.msra.mxu0 0.0
        %779 = vmatprep.subr.mxu0 0.0
        %780 = vmatpush1.msra.mxu0 0.0
        %781 = vmatprep.subr.mxu0 0.0
        %782 = vmatpush1.msra.mxu0 0.0
        %783 = vmatprep.subr.mxu0 0.0
        %784 = vmatpush1.msra.mxu0 0.0
        %785 = vmatprep.subr.mxu0 0.0
        %786 = vmatpush1.msra.mxu0 0.0
        %787 = vmatprep.mubr.f32.mxu0 0.0
        %788 = vmatmul.mubr.f32.gmra.mrb[0].mxu0 %v646
        %v789 = vpop.f32.mrb[0].mxu0
        %v790 = vadd.f32 0.0, %v789
        %v791 = vpop.f32.mrb[0].mxu0
        %792 = vdwg.mxu0
        %793 = vst.msk [vmem:[%s376] sm:$0xff] %vm391, %v790
        %s794 = sand.u32 %s189, 1
        %s795 = scalar_lea.sflag [#allocation4], %s794
        %s796 = sand.u32 %s189, 1
        %s797 = smul.addr %s796, 8
        %s798 = scalar_lea.vmem [#allocation5], %s797
        %s799 = sand.u32 %s29, 1
        %s800 = scalar_lea.sflag [#allocation7], %s799
        %s801 = sand.u32 %s217, 1
        %s802 = smul.addr %s801, 8
        %s803 = scalar_lea.vmem [#allocation6], %s802
        %s804 = sand.u32 %s29, 1
        %s805 = scalar_lea.sflag [#allocation7], %s804
        %s806 = sand.u32 %s245, 1
        %s807 = smul.addr %s806, 8
        %s808 = scalar_lea.vmem [#allocation8], %s807
        // Predicated region
        $region49: #{tpu_custom_call.1} parent=43 // pred_check
          %p809 = pneg %p199
        $region50: #{tpu_custom_call.1} parent=43 // pred_check_branch
          %811 = sbr.rel (%p809) target = $region52
        $region51: #{tpu_custom_call.1} parent=43 // pred_region
          %s813 = ssub.s32 128, 128
          %814 = vsyncadd %s795, %s813
          %s815 = sadd.s32 %s34, %s33
          %s816 = smul.addr %s815, 128
          %s817 = scalar_lea.hbm %s6, %s816
          %s819 = sshll.u32 %s798, 4
          %s820 = int_to_ptr.vmem [resolvable:$true] %s819
          %822 = dma.vmem_to_hbm [thread:$0]  %s820, 128, %s817, %s795
        $region52: #{tpu_custom_call.1} parent=43 // pred_fallthru
          _
        // Predicated region
        $region53: #{tpu_custom_call.1} parent=43 // pred_check
          %p823 = pneg %p227
        $region54: #{tpu_custom_call.1} parent=43 // pred_check_branch
          %825 = sbr.rel (%p823) target = $region56
        $region55: #{tpu_custom_call.1} parent=43 // pred_region
          %s827 = ssub.s32 128, 128
          %828 = vsyncadd %s800, %s827
          %s829 = sadd.s32 %s34, %s33
          %s830 = smul.addr %s829, 128
          %s831 = scalar_lea.hbm %s7, %s830
          %s833 = sshll.u32 %s803, 4
          %s834 = int_to_ptr.vmem [resolvable:$true] %s833
          %836 = dma.vmem_to_hbm [thread:$0]  %s834, 128, %s831, %s800
        $region56: #{tpu_custom_call.1} parent=43 // pred_fallthru
          _
        // Predicated region
        $region57: #{tpu_custom_call.1} parent=43 // pred_check
          %p837 = pneg %p255
        $region58: #{tpu_custom_call.1} parent=43 // pred_check_branch
          %839 = sbr.rel (%p837) target = $region60
        $region59: #{tpu_custom_call.1} parent=43 // pred_region
          %s841 = ssub.s32 128, 128
          %842 = vsyncadd %s805, %s841
          %s843 = sadd.s32 %s34, %s33
          %s844 = smul.addr %s843, 128
          %s845 = scalar_lea.hbm %s8, %s844
          %s847 = sshll.u32 %s808, 4
          %s848 = int_to_ptr.vmem [resolvable:$true] %s847
          %850 = dma.vmem_to_hbm [thread:$0]  %s848, 128, %s845, %s805
        $region60: #{tpu_custom_call.1} parent=43 // pred_fallthru
          _
      $region44: #{tpu_custom_call.1} parent=5 // pred_fallthru
        _
      %p851 = scmp.le.s32.totalorder 2, %s24
      // Predicated region
      $region61: #{tpu_custom_call.1} parent=5 // pred_check
        %p852 = pneg %p851
      $region62: #{tpu_custom_call.1} parent=5 // pred_check_branch
        %854 = sbr.rel (%p852) target = $region64
      $region63: #{tpu_custom_call.1} parent=5 // pred_region
        %s855 = ssub.s32 %s24, 2
        // Predicated region
        $region65: #{tpu_custom_call.1} parent=63 // pred_check
          %p856 = pneg %p205
        $region66: #{tpu_custom_call.1} parent=63 // pred_check_branch
          %858 = sbr.rel (%p856) target = $region68
        $region67: #{tpu_custom_call.1} parent=63 // pred_region
          %s859 = sand.u32 %s190, 1
          %s860 = scalar_lea.sflag [#allocation4], %s859
          %s861 = sand.u32 %s190, 1
          %s862 = smul.addr %s861, 8
          %s863 = scalar_lea.vmem [#allocation5], %s862
          %864 = dma.done %s860, 128
        $region68: #{tpu_custom_call.1} parent=63 // pred_fallthru
          _
        // Predicated region
        $region69: #{tpu_custom_call.1} parent=63 // pred_check
          %p865 = pneg %p233
        $region70: #{tpu_custom_call.1} parent=63 // pred_check_branch
          %867 = sbr.rel (%p865) target = $region72
        $region71: #{tpu_custom_call.1} parent=63 // pred_region
          %s868 = sand.u32 %s30, 1
          %s869 = scalar_lea.sflag [#allocation7], %s868
          %s870 = sand.u32 %s218, 1
          %s871 = smul.addr %s870, 8
          %s872 = scalar_lea.vmem [#allocation6], %s871
          %873 = dma.done %s869, 128
        $region72: #{tpu_custom_call.1} parent=63 // pred_fallthru
          _
        // Predicated region
        $region73: #{tpu_custom_call.1} parent=63 // pred_check
          %p874 = pneg %p261
        $region74: #{tpu_custom_call.1} parent=63 // pred_check_branch
          %876 = sbr.rel (%p874) target = $region76
        $region75: #{tpu_custom_call.1} parent=63 // pred_region
          %s877 = sand.u32 %s30, 1
          %s878 = scalar_lea.sflag [#allocation7], %s877
          %s879 = sand.u32 %s246, 1
          %s880 = smul.addr %s879, 8
          %s881 = scalar_lea.vmem [#allocation8], %s880
          %882 = dma.done %s878, 128
        $region76: #{tpu_custom_call.1} parent=63 // pred_fallthru
          _
      $region64: #{tpu_custom_call.1} parent=5 // pred_fallthru
        _
    $region6: #{tpu_custom_call.1} parent=1 // loop_footer
      %s28 = sadd.s32 1, %s24
    $region7: #{tpu_custom_call.1} parent=1 // loop_footer_branch
      %23 = sbr.rel target = $region3
    $region8: #{tpu_custom_call.1} parent=1 // loop_exit
      _
    %883 = vsyncpa [#allocation3], 1
    %s884 = scalar_lea.sflag [#allocation3], 1
    %885 = vsyncpa %s884, 1
    %886 = vsyncpa [#allocation4], 1
    %s887 = scalar_lea.sflag [#allocation4], 1
    %888 = vsyncpa %s887, 1
    %889 = vsyncpa [#allocation7], 1
    %s890 = scalar_lea.sflag [#allocation7], 1
    %891 = vsyncpa %s890, 1

</llo_original>
